<compile_context>
chip_gen: v5e
topology: v5e:2x2
jax: 0.10.0
libtpu: 0.0.40
codegen_flags: <defaults>
</compile_context>

<pallas_src>
import functools

import jax
import jax.numpy as jnp
from jax import lax
from jax.experimental import pallas as pl
from jax.experimental.pallas import tpu as pltpu


def _round_up(x, m):
    return (x + m - 1) // m * m


def _vmem_capacity_bytes():
    """Physical per-core VMEM (v5e/v6e: 128 MiB, v7x: 64 MiB); safe fallback."""
    try:
        cap = getattr(pltpu.get_tpu_info(), "vmem_capacity_bytes", None)
        if cap:
            return int(cap)
    except Exception:  # narrow: hardware query only, never masks kernel errors
        pass
    return 64 * 1024 * 1024  # conservative (v7x-sized) fallback


def patch_embed_kernel(p_ref, w_ref, b_ref, o_ref):
    # p_ref: (tile_m, K_pad)  patches      (model/compute dtype)
    # w_ref: (E_pad,  K_pad)  projection   (model/compute dtype, NOT transposed)
    # b_ref: (1, E_pad)       bias         (f32)
    # o_ref: (tile_m, E_pad)               (model dtype)
    acc = lax.dot_general(
        p_ref[...], w_ref[...],
        dimension_numbers=(((1,), (1,)), ((), ())),   # contract K on both (q@k.T form)
        preferred_element_type=jnp.float32)
    o_ref[...] = (acc + b_ref[...]).astype(o_ref.dtype)


def _build_patch_embed_call(M, K_pad, E_pad, tile_m, out_dtype, *,
                            x_bytes, w_bytes, o_bytes, vmem_limit_bytes):
    cost = pl.CostEstimate(
        flops=2 * M * K_pad * E_pad,
        transcendentals=0,
        bytes_accessed=(M * K_pad * x_bytes + K_pad * E_pad * w_bytes
                        + M * E_pad * o_bytes + E_pad * 4),
    )
    return pl.pallas_call(
        patch_embed_kernel,
        out_shape=jax.ShapeDtypeStruct((M, E_pad), out_dtype),
        grid_spec=pltpu.PrefetchScalarGridSpec(
            num_scalar_prefetch=0,
            grid=(pl.cdiv(M, tile_m),),
            in_specs=[
                pl.BlockSpec((tile_m, K_pad), lambda i: (i, 0)),
                pl.BlockSpec((E_pad, K_pad), lambda i: (0, 0)),   # grid-invariant
                pl.BlockSpec((1, E_pad), lambda i: (0, 0)),       # grid-invariant
            ],
            out_specs=pl.BlockSpec((tile_m, E_pad), lambda i: (i, 0)),
        ),
        compiler_params=pltpu.CompilerParams(
            dimension_semantics=("parallel",),     # shard M tiles across TCs (v7x)
            vmem_limit_bytes=vmem_limit_bytes,     # generation-aware scoped limit
            # Allow XLA to fuse the patchify reshape/transpose (producer of
            # input 0) into this call's input pipeline -> no HBM round trip.
            allow_input_fusion=[True, False, False],
        ),
        cost_estimate=cost,
    )


def patch_embed(x, weight, bias, *, patch_size, tubelet_size,
                tile_m=2048, compute_dtype=None):
    """x: (B, C, T, H, W)  weight: (E, C, tub, ph, pw)  bias: (E,)
    returns (B, num_patches, E)  (== Conv3d -> flatten(2) -> transpose(1,2)).

    compute_dtype: optionally cast patches/weight (e.g. jnp.bfloat16 on v5e) while
    keeping f32 accumulation + f32 bias; default None keeps the model dtype.
    """
    B, C, T, H, W = x.shape
    E = weight.shape[0]
    ph, pw = patch_size
    tub = tubelet_size
    Tg, Hg, Wg = T // tub, H // ph, W // pw
    N = Tg * Hg * Wg
    K = C * tub * ph * pw
    M = B * N

    # --- patchify in the MODEL dtype (no f32 upcast). K flattened in
    # (C, t, h, w) order to match PyTorch's OIDHW weight layout. Under jit,
    # allow_input_fusion lets XLA fuse this chain into the pallas_call.
    xp = x.reshape(B, C, Tg, tub, Hg, ph, Wg, pw)
    xp = xp.transpose(0, 2, 4, 6, 1, 3, 5, 7)        # (B, Tg, Hg, Wg, C, tub, ph, pw)
    patches = xp.reshape(M, K)

    # --- weight as (E, K) (plain reshape, no transpose), bias as f32.
    # Pad K and E up to multiples of 128: lane-dense loads/stores, full MXU
    # passes.  Zero pads are mathematically inert and sliced off below.
    E_pad = _round_up(E, 128)
    K_pad = _round_up(K, 128)
    w_mat = weight.reshape(E, K)
    b_mat = bias.reshape(1, E).astype(jnp.float32)
    if K_pad != K:
        patches = jnp.pad(patches, ((0, 0), (0, K_pad - K)))
        w_mat = jnp.pad(w_mat, ((0, 0), (0, K_pad - K)))
    if E_pad != E:
        w_mat = jnp.pad(w_mat, ((0, E_pad - E), (0, 0)))
        b_mat = jnp.pad(b_mat, ((0, 0), (0, E_pad - E)))

    if compute_dtype is not None:     # e.g. bf16 operands on v5e; f32 accum kept
        patches = patches.astype(compute_dtype)
        w_mat = w_mat.astype(compute_dtype)

    x_bytes = jnp.dtype(patches.dtype).itemsize
    w_bytes = jnp.dtype(w_mat.dtype).itemsize
    o_bytes = jnp.dtype(x.dtype).itemsize

    # --- generation-aware VMEM budget / scoped limit.
    vmem_cap = _vmem_capacity_bytes()
    if vmem_cap >= 128 * 1024 * 1024:          # v5e / v6e
        vmem_limit = 100 * 1024 * 1024
        vmem_budget = 72 * 1024 * 1024
    else:                                      # v7x (64 MiB physical)
        vmem_limit = 44 * 1024 * 1024
        vmem_budget = 32 * 1024 * 1024

    def vmem_estimate(tm):
        return (2 * tm * K_pad * x_bytes          # double-buffered patch tiles
                + 2 * K_pad * E_pad * w_bytes     # weight (grid-invariant, dbl-buffered)
                + 2 * E_pad * 4                   # bias
                + 2 * tm * E_pad * o_bytes)       # double-buffered output tiles

    # --- tile_m: 256-aligned (multiple of v5e's 128 and v6e/v7x's 256 MXU rows),
    # at least 2 grid steps when M allows (feeds both v7x TensorCores), clamped
    # to the generation VMEM budget.  Ragged last block is masked by Pallas.
    M8 = _round_up(M, 8)
    tile_m = min(tile_m, M8)
    if M >= 2 * 256:
        tile_m = min(tile_m, _round_up(-(-M // 2), 256))
    while tile_m > 256 and vmem_estimate(tile_m) > vmem_budget:
        tile_m = max(256, _round_up(tile_m // 2, 256))
    tile_m = (tile_m // 256) * 256 if tile_m >= 256 else max(8, _round_up(tile_m, 8))

    call = _build_patch_embed_call(M, K_pad, E_pad, tile_m, x.dtype,
                                   x_bytes=x_bytes, w_bytes=w_bytes,
                                   o_bytes=o_bytes, vmem_limit_bytes=vmem_limit)
    out = call(patches, w_mat, b_mat)

    if E_pad != E:
        out = out[:, :E]
    return out.reshape(B, N, E)


def _reference(x, weight, bias, *, patch_size, tubelet_size):
    # Pure-JAX reference using a real 3D convolution (stride == kernel).
    out = lax.conv_general_dilated(
        x.astype(jnp.float32), weight.astype(jnp.float32),
        window_strides=(tubelet_size, patch_size[0], patch_size[1]),
        padding="VALID",
        dimension_numbers=("NCDHW", "OIDHW", "NCDHW"),
    ) + bias.astype(jnp.float32)[None, :, None, None, None]
    B, E = out.shape[0], out.shape[1]
    return out.reshape(B, E, -1).transpose(0, 2, 1)   # flatten(2).transpose(1,2)


if __name__ == "__main__":
    # Small config consistent with the module:
    # img_size=16, patch_size=8, num_frames=2, tubelet_size=1, in_chans=4, embed_dim=32
    B, C, T, H, W = 2, 4, 2, 16, 16
    patch_size = (8, 8)
    tubelet_size = 1
    embed_dim = 32

    key = jax.random.PRNGKey(0)
    kx, kw, kb = jax.random.split(key, 3)
    x = jax.random.normal(kx, (B, C, T, H, W), dtype=jnp.float32)
    # Conv3d weight shape: (embed_dim, in_chans, tubelet, ph, pw); bias: (embed_dim,)
    weight = jax.random.normal(
        kw, (embed_dim, C, tubelet_size, patch_size[0], patch_size[1]),
        dtype=jnp.float32) * 0.02
    bias = jax.random.normal(kb, (embed_dim,), dtype=jnp.float32) * 0.02

    ref = _reference(x, weight, bias,
                     patch_size=patch_size, tubelet_size=tubelet_size)
    num_patches = (T // tubelet_size) * (H // patch_size[0]) * (W // patch_size[1])

    # jit the whole forward so the patchify chain is visible to XLA and can be
    # fused into the pallas_call input pipeline (allow_input_fusion).
    fwd = jax.jit(functools.partial(
        patch_embed, patch_size=patch_size, tubelet_size=tubelet_size))

    # f32 path (tight check against the conv reference).
    out = jax.block_until_ready(fwd(x, weight, bias))
    assert out.shape == (B, num_patches, embed_dim)
    assert jnp.allclose(out, ref, atol=1e-4, rtol=1e-4)

    # bf16 path (production Prithvi dtype): bf16 operands, f32 accumulation.
    out_bf16 = jax.block_until_ready(
        fwd(x.astype(jnp.bfloat16), weight.astype(jnp.bfloat16), bias))
    assert out_bf16.dtype == jnp.bfloat16
    assert jnp.allclose(out_bf16.astype(jnp.float32), ref, atol=5e-2, rtol=5e-2)

    print("KERNEL_OK")
</pallas_src>

<mosaic_0001>
module attributes {stable_mosaic.version = 11 : i64} {
  func.func @patch_embed_kernel(%arg0: i32, %arg1: memref<16x256xf32, #tpu.memory_space<vmem>>, %arg2: memref<128x256xf32, #tpu.memory_space<vmem>>, %arg3: memref<1x128xf32, #tpu.memory_space<vmem>>, %arg4: memref<16x128xf32, #tpu.memory_space<vmem>>) attributes {dimension_semantics = [#tpu.dimension_semantics<parallel>], iteration_bounds = array<i64: 1>, scalar_prefetch = 0 : i64, scratch_operands = 0 : i64, tpu.core_type = #tpu.core_type<tc>, window_params = [{transform_indices = @transform_0, window_bounds = array<i64: 16, 256>}, {pipeline_mode = #tpu.pipeline_mode<synchronous>, transform_indices = @transform_1, window_bounds = array<i64: 128, 256>}, {pipeline_mode = #tpu.pipeline_mode<synchronous>, transform_indices = @transform_2, window_bounds = array<i64: 1, 128>}, {transform_indices = @transform_3, window_bounds = array<i64: 16, 128>}]} {
    %c0 = arith.constant 0 : index
    %c0_0 = arith.constant 0 : index
    %0 = vector.load %arg1[%c0, %c0_0] : memref<16x256xf32, #tpu.memory_space<vmem>>, vector<16x256xf32>
    %c0_1 = arith.constant 0 : index
    %c0_2 = arith.constant 0 : index
    %1 = vector.load %arg2[%c0_1, %c0_2] : memref<128x256xf32, #tpu.memory_space<vmem>>, vector<128x256xf32>
    %cst = arith.constant dense<0.000000e+00> : vector<16x128xf32>
    %2 = tpu.matmul %0, %1, %cst {dimension_numbers = #tpu.dot_dimension_numbers<[1], [1], [0], [0], [0, 0, 1, 0], [], []>} : vector<16x256xf32>, vector<128x256xf32>, vector<16x128xf32> -> vector<16x128xf32>
    %c0_3 = arith.constant 0 : index
    %c0_4 = arith.constant 0 : index
    %3 = vector.load %arg3[%c0_3, %c0_4] : memref<1x128xf32, #tpu.memory_space<vmem>>, vector<1x128xf32>
    %4 = vector.broadcast %3 : vector<1x128xf32> to vector<16x128xf32>
    %5 = arith.addf %2, %4 : vector<16x128xf32>
    %c0_5 = arith.constant 0 : index
    %c0_6 = arith.constant 0 : index
    %6 = vector.load %arg4[%c0_5, %c0_6] : memref<16x128xf32, #tpu.memory_space<vmem>>, vector<16x128xf32>
    tpu.vector_store %arg4[%c0_5, %c0_6], %5 {strides = array<i32>} : memref<16x128xf32, #tpu.memory_space<vmem>>, vector<16x128xf32>,
    return
  }
  func.func @transform_0(%arg0: i32) -> (i32, i32) {
    %c0_i32 = arith.constant 0 : i32
    %c0_i32_0 = arith.constant 0 : i32
    return %arg0, %c0_i32 : i32, i32
  }
  func.func @transform_1(%arg0: i32) -> (i32, i32) {
    %c0_i32 = arith.constant 0 : i32
    %c0_i32_0 = arith.constant 0 : i32
    %c0_i32_1 = arith.constant 0 : i32
    return %c0_i32, %c0_i32_0 : i32, i32
  }
  func.func @transform_2(%arg0: i32) -> (i32, i32) {
    %c0_i32 = arith.constant 0 : i32
    %c0_i32_0 = arith.constant 0 : i32
    %c0_i32_1 = arith.constant 0 : i32
    return %c0_i32, %c0_i32_0 : i32, i32
  }
  func.func @transform_3(%arg0: i32) -> (i32, i32) {
    %c0_i32 = arith.constant 0 : i32
    %c0_i32_0 = arith.constant 0 : i32
    return %arg0, %c0_i32 : i32, i32
  }
}

</mosaic_0001>

<llo_original>
// kernel: patch_embed.1
$region0: #{patch_embed.1}
  #allocation0 [shape = 'u32[]', space=smem, size = 0x4, offset = 0x4, fixed_abs, tag = 'smem constant byte address 0x4 - core index']
  #allocation1 [shape = 'u32[72,128]{1,0:T(1,128)}', space=vmem, size = 0x9000, scoped, tag = 'internal scratch']
  %s0 = inlined_call_operand.vmem [shape: f32[16,256], index: 0, kind: input, shape index: {}]
  %s1 = inlined_call_operand.vmem [shape: f32[128,256], index: 1, kind: input, shape index: {}]
  %s2 = inlined_call_operand.vmem [shape: f32[1,128], index: 2, kind: input, shape index: {}]
  %s3 = inlined_call_operand.vmem [shape: f32[16,128], index: 3, kind: output, shape index: {}]
  %s4 = sld [smem:[#allocation0]]
  $region22: #{patch_embed.1} parent=0
    _
  %s6 = ssub.s32 1, %s4
  %s7 = scalar_select 0, %s6, %s4
  // Predicated region
  $region2: #{patch_embed.1} parent=0 // pred_check
    _
  $region3: #{patch_embed.1} parent=0 // pred_check_branch
    %9 = sbr.rel (0) target = $region5
  $region4: #{patch_embed.1} parent=0 // pred_region
    _
  $region5: #{patch_embed.1} parent=0 // pred_fallthru
    _
  // Predicated region
  $region6: #{patch_embed.1} parent=0 // pred_check
    _
  $region7: #{patch_embed.1} parent=0 // pred_check_branch
    %11 = sbr.rel (0) target = $region9
  $region8: #{patch_embed.1} parent=0 // pred_region
    _
  $region9: #{patch_embed.1} parent=0 // pred_fallthru
    _
  // Predicated region
  $region10: #{patch_embed.1} parent=0 // pred_check
    _
  $region11: #{patch_embed.1} parent=0 // pred_check_branch
    %13 = sbr.rel (0) target = $region13
  $region12: #{patch_embed.1} parent=0 // pred_region
    _
  $region13: #{patch_embed.1} parent=0 // pred_fallthru
    _
  %v14 = vld [vmem:[%s0] sm:$0xff]
  %v15 = vld [vmem:[%s0 + $0x8] sm:$0xff]
  %v16 = vld [vmem:[%s0 + $0x10] sm:$0xff]
  %v17 = vld [vmem:[%s0 + $0x18] sm:$0xff]
  %v18 = vld [vmem:[%s1] sm:$0xff]
  %v19 = vld [vmem:[%s1 + $0x8] sm:$0xff]
  %v20 = vld [vmem:[%s1 + $0x10] sm:$0xff]
  %v21 = vld [vmem:[%s1 + $0x18] sm:$0xff]
  %v22 = vld [vmem:[%s1 + $0x20] sm:$0xff]
  %v23 = vld [vmem:[%s1 + $0x28] sm:$0xff]
  %v24 = vld [vmem:[%s1 + $0x30] sm:$0xff]
  %v25 = vld [vmem:[%s1 + $0x38] sm:$0xff]
  %v26 = vld [vmem:[%s1 + $0x40] sm:$0xff]
  %v27 = vld [vmem:[%s1 + $0x48] sm:$0xff]
  %v28 = vld [vmem:[%s1 + $0x50] sm:$0xff]
  %v29 = vld [vmem:[%s1 + $0x58] sm:$0xff]
  %v30 = vld [vmem:[%s1 + $0x60] sm:$0xff]
  %v31 = vld [vmem:[%s1 + $0x68] sm:$0xff]
  %v32 = vld [vmem:[%s1 + $0x70] sm:$0xff]
  %v33 = vld [vmem:[%s1 + $0x78] sm:$0xff]
  %v34 = vld [vmem:[%s1 + $0x80] sm:$0xff]
  %v35 = vld [vmem:[%s1 + $0x88] sm:$0xff]
  %v36 = vld [vmem:[%s1 + $0x90] sm:$0xff]
  %v37 = vld [vmem:[%s1 + $0x98] sm:$0xff]
  %v38 = vld [vmem:[%s1 + $0xa0] sm:$0xff]
  %v39 = vld [vmem:[%s1 + $0xa8] sm:$0xff]
  %v40 = vld [vmem:[%s1 + $0xb0] sm:$0xff]
  %v41 = vld [vmem:[%s1 + $0xb8] sm:$0xff]
  %v42 = vld [vmem:[%s1 + $0xc0] sm:$0xff]
  %v43 = vld [vmem:[%s1 + $0xc8] sm:$0xff]
  %v44 = vld [vmem:[%s1 + $0xd0] sm:$0xff]
  %v45 = vld [vmem:[%s1 + $0xd8] sm:$0xff]
  %v46 = vld [vmem:[%s1 + $0xe0] sm:$0xff]
  %v47 = vld [vmem:[%s1 + $0xe8] sm:$0xff]
  %v48 = vld [vmem:[%s1 + $0xf0] sm:$0xff]
  %v49 = vld [vmem:[%s1 + $0xf8] sm:$0xff]
  %v50 = vld [vmem:[%s2] sm:$0x1]
  %v52 = vperm.slane %v50, 0
  %54 = vmatpush.xpose.msra.mxu0 %v48
  %55 = vmatpush.xpose.msra.mxu0 %v46
  %56 = vmatpush.xpose.msra.mxu0 %v44
  %57 = vmatpush.xpose.msra.mxu0 %v42
  %58 = vmatpush.xpose.msra.mxu0 %v40
  %59 = vmatpush.xpose.msra.mxu0 %v38
  %60 = vmatpush.xpose.msra.mxu0 %v36
  %61 = vmatpush.xpose.msra.mxu0 %v34
  %62 = vmatpush.xpose.msra.mxu0 %v32
  %63 = vmatpush.xpose.msra.mxu0 %v30
  %64 = vmatpush.xpose.msra.mxu0 %v28
  %65 = vmatpush.xpose.msra.mxu0 %v26
  %66 = vmatpush.xpose.msra.mxu0 %v24
  %67 = vmatpush.xpose.msra.mxu0 %v22
  %68 = vmatpush.xpose.msra.mxu0 %v20
  %69 = vmatpush.xpose.msra.mxu0 %v18
  %70 = vmatmul.f32.gmra.mxu0 %v14
  %v71 = vpop.f32.mrf.mxu0
  %v72 = vadd.f32 %v52, %v71
  %73 = vmatmul.f32.gmra.mxu0 %v16
  %v74 = vpop.f32.mrf.mxu0
  %v75 = vadd.f32 %v52, %v74
  %76 = vdwg.mxu0
  %77 = vmatpush.xpose.msra.mxu0 %v49
  %78 = vmatpush.xpose.msra.mxu0 %v47
  %79 = vmatpush.xpose.msra.mxu0 %v45
  %80 = vmatpush.xpose.msra.mxu0 %v43
  %81 = vmatpush.xpose.msra.mxu0 %v41
  %82 = vmatpush.xpose.msra.mxu0 %v39
  %83 = vmatpush.xpose.msra.mxu0 %v37
  %84 = vmatpush.xpose.msra.mxu0 %v35
  %85 = vmatpush.xpose.msra.mxu0 %v33
  %86 = vmatpush.xpose.msra.mxu0 %v31
  %87 = vmatpush.xpose.msra.mxu0 %v29
  %88 = vmatpush.xpose.msra.mxu0 %v27
  %89 = vmatpush.xpose.msra.mxu0 %v25
  %90 = vmatpush.xpose.msra.mxu0 %v23
  %91 = vmatpush.xpose.msra.mxu0 %v21
  %92 = vmatpush.xpose.msra.mxu0 %v19
  %93 = vmatmul.f32.gmra.mxu0 %v15
  %v94 = vpop.f32.mrf.mxu0
  %v95 = vadd.f32 %v72, %v94
  %96 = vmatmul.f32.gmra.mxu0 %v17
  %v97 = vpop.f32.mrf.mxu0
  %v98 = vadd.f32 %v75, %v97
  %99 = vdwg.mxu0
  %100 = vst [vmem:[%s3] sm:$0xff] %v95
  %101 = vst [vmem:[%s3 + $0x8] sm:$0xff] %v98
  // Predicated region
  $region14: #{patch_embed.1} parent=0 // pred_check
    _
  $region15: #{patch_embed.1} parent=0 // pred_check_branch
    %103 = sbr.rel (0) target = $region17
  $region16: #{patch_embed.1} parent=0 // pred_region
    _
  $region17: #{patch_embed.1} parent=0 // pred_fallthru
    _
  // Predicated region
  $region18: #{patch_embed.1} parent=0 // pred_check
    _
  $region19: #{patch_embed.1} parent=0 // pred_check_branch
    %105 = sbr.rel (0) target = $region21
  $region20: #{patch_embed.1} parent=0 // pred_region
    _
  $region21: #{patch_embed.1} parent=0 // pred_fallthru
    _

</llo_original>
